<compile_context>
chip_gen: v6e
topology: v6e:2x2x1
jax: 0.10.0
libtpu: 0.0.40
codegen_flags: <defaults>
</compile_context>

<pallas_src>
import functools

import jax
import jax.numpy as jnp
from jax.experimental import pallas as pl
from jax.experimental.pallas import tpu as pltpu


def _round_up(x, m):
    return ((x + m - 1) // m) * m


def fusion_classifier_attention_kernel(
    rgb_ref,                     # (TB*C, Dr)  per-tile RGB clip features
    emg_ref,                     # (TB*C, De)  per-tile EMG clip features
    wr_ref, we_ref, bf_ref,      # (Dr, Hp), (De, Hp), (1, Hp)  -- FusionModel
    qcol_ref,                    # (Hp, 1)                      -- attention query
    w1_ref, b1_ref,              # (Hp, H2p), (1, H2p)          -- fc1
    w2_ref, b2_ref,              # (H2p, NCp), (1, NCp)         -- fc2
    out_ref,                     # (TB, NCp)   lane-dense logits slab
    *, n_clips, topk, scale,
):
    C = n_clips
    Hp = wr_ref.shape[1]
    TB = rgb_ref.shape[0] // C

    # --- FusionModel: two MXU dots (no wrapper concat), f32 accumulate -----
    fused = jnp.dot(rgb_ref[...], wr_ref[...],
                    preferred_element_type=jnp.float32)
    fused = fused + jnp.dot(emg_ref[...], we_ref[...],
                            preferred_element_type=jnp.float32)
    fused = jnp.maximum(fused + bf_ref[...], 0.0)            # (TB*C, Hp) f32
    fused3 = fused.reshape(TB, C, Hp)                        # leading-dim split, free

    # --- DotAttention scores on the MXU: (TB*C,Hp)@(Hp,1) ------------------
    scores = jnp.dot(fused, qcol_ref[...].astype(jnp.float32),
                     preferred_element_type=jnp.float32)     # (TB*C, 1)
    scores3 = scores.reshape(TB, C, 1) * scale               # (TB, C, 1)

    # --- top-k clip selection + softmax over selected clips (f32, exact) ---
    NEG = jnp.float32(-1e30)
    sel = jnp.zeros_like(scores3, dtype=jnp.bool_)
    s = scores3
    for _ in range(topk):                # small static int -> unrolled
        m = jnp.max(s, axis=1, keepdims=True)
        hit = (s == m) & jnp.logical_not(sel)
        sel = sel | hit
        s = jnp.where(hit, NEG, s)

    masked = jnp.where(sel, scores3, NEG)
    m2 = jnp.max(masked, axis=1, keepdims=True)
    e = jnp.exp(masked - m2)
    denom = jnp.sum(e, axis=1, keepdims=True)
    attn = e / denom                     # exact: only TB scalars per tile

    # attention-weighted clip sum -> (TB, Hp), f32
    av = jnp.sum(attn * fused3, axis=1)

    # --- classifier head: fc1 -> ReLU -> fc2 (MXU, f32 accumulate) ---------
    h1 = jnp.dot(av.astype(w1_ref.dtype), w1_ref[...],
                 preferred_element_type=jnp.float32) + b1_ref[...]
    h1 = jnp.maximum(h1, 0.0)
    logits = jnp.dot(h1.astype(w2_ref.dtype), w2_ref[...],
                     preferred_element_type=jnp.float32) + b2_ref[...]
    out_ref[...] = logits.astype(out_ref.dtype)               # lane-dense store


def fusion_classifier_attention(rgb, emg, params, topk, *,
                                batch_tile=128, lane=128,
                                mxu_dtype=jnp.bfloat16):
    B, C, Dr = rgb.shape
    De = emg.shape[-1]
    H = params['wr'].shape[1]
    H2 = params['w1'].shape[1]
    n_classes = params['w2'].shape[1]

    Hp = _round_up(H, lane)
    H2p = _round_up(H2, lane)
    NCp = _round_up(n_classes, lane)

    def pad2(a, rows, cols):
        return jnp.pad(a, ((0, rows - a.shape[0]), (0, cols - a.shape[1])))

    wr_p = pad2(params['wr'], Dr, Hp)
    we_p = pad2(params['we'], De, Hp)
    bf_p = pad2(params['bf'], 1, Hp).astype(jnp.float32)
    q_col = jnp.pad(params['q'].reshape(H, 1),
                    ((0, Hp - H), (0, 0))).astype(jnp.float32)    # (Hp, 1)
    w1_p = pad2(params['w1'], Hp, H2p)
    b1_p = pad2(params['b1'], 1, H2p).astype(jnp.float32)
    w2_p = pad2(params['w2'], H2p, NCp)
    b2_p = pad2(params['b2'], 1, NCp).astype(jnp.float32)

    if mxu_dtype is not None:   # bf16 by default: native MXU dtype on v5e/v6e/v7x
        rgb = rgb.astype(mxu_dtype)
        emg = emg.astype(mxu_dtype)
        wr_p = wr_p.astype(mxu_dtype)
        we_p = we_p.astype(mxu_dtype)
        w1_p = w1_p.astype(mxu_dtype)
        w2_p = w2_p.astype(mxu_dtype)

    # Batch tiling: large TB so TB*C fills MXU passes; keep >=2 grid steps
    # when B is large enough so the "parallel" axis can shard over v7x's two
    # TensorCores (double-buffered activation DMA either way).
    TB = min(batch_tile, B)
    if pl.cdiv(B, TB) < 2 and B >= 16:
        TB = _round_up(pl.cdiv(B, 2), 8)
    Bp = _round_up(B, TB)
    if Bp != B:
        rgb = jnp.pad(rgb, ((0, Bp - B), (0, 0), (0, 0)))
        emg = jnp.pad(emg, ((0, Bp - B), (0, 0), (0, 0)))
    # Contiguous flattens: metadata-only, no extra HBM pass.
    rgb_flat = rgb.reshape(Bp * C, Dr)
    emg_flat = emg.reshape(Bp * C, De)

    kernel = functools.partial(
        fusion_classifier_attention_kernel,
        n_clips=C, topk=topk, scale=1.0 / float(H) ** 0.5)

    def const_spec(shape):
        # Constant block index: the pipeline keeps these VMEM-resident and
        # does not re-issue their DMAs on later grid steps.
        nd = len(shape)
        return pl.BlockSpec(shape, lambda i, _nd=nd: (0,) * _nd)

    out_padded = pl.pallas_call(
        kernel,
        out_shape=jax.ShapeDtypeStruct((Bp, NCp), jnp.float32),
        grid=(Bp // TB,),
        in_specs=[
            pl.BlockSpec((TB * C, Dr), lambda i: (i, 0)),   # rgb tile
            pl.BlockSpec((TB * C, De), lambda i: (i, 0)),   # emg tile
            const_spec((Dr, Hp)),                            # Wr
            const_spec((De, Hp)),                            # We
            const_spec((1, Hp)),                             # bf
            const_spec((Hp, 1)),                             # q (column)
            const_spec((Hp, H2p)),                           # W1
            const_spec((1, H2p)),                            # b1
            const_spec((H2p, NCp)),                          # W2
            const_spec((1, NCp)),                            # b2
        ],
        out_specs=pl.BlockSpec((TB, NCp), lambda i: (i, 0)),
        compiler_params=pltpu.CompilerParams(
            dimension_semantics=("parallel",)),
    )(rgb_flat, emg_flat, wr_p, we_p, bf_p, q_col, w1_p, b1_p, w2_p, b2_p)

    return out_padded[:B, :n_classes]


def reference_forward(rgb, emg, p, topk):
    """Pure-JAX reference mirroring the kernel math (exact softmax divide)."""
    fused = jnp.maximum(
        jnp.einsum('bcd,dh->bch', rgb, p['wr'])
        + jnp.einsum('bce,eh->bch', emg, p['we'])
        + p['bf'][None], 0.0)
    H = fused.shape[-1]
    scores = jnp.sum(fused * p['q'][None], axis=-1) / jnp.sqrt(jnp.float32(H))
    NEG = jnp.float32(-1e30)
    sel = jnp.zeros_like(scores, dtype=jnp.bool_)
    s = scores
    for _ in range(topk):
        m = jnp.max(s, axis=1, keepdims=True)
        hit = (s == m) & jnp.logical_not(sel)
        sel = sel | hit
        s = jnp.where(hit, NEG, s)
    masked = jnp.where(sel, scores, NEG)
    m2 = jnp.max(masked, axis=1, keepdims=True)
    e = jnp.exp(masked - m2)
    attn = e / jnp.sum(e, axis=1, keepdims=True)
    av = jnp.sum(attn[:, :, None] * fused, axis=1)
    h1 = jnp.maximum(av @ p['w1'] + p['b1'], 0.0)
    return h1 @ p['w2'] + p['b2']


if __name__ == "__main__":
    # Small shapes consistent with the module's forward.
    B, C = 2, 8                  # batch_size, n_clips
    Dr, De = 16, 16              # per-clip RGB / EMG feature dims
    H = 32                       # hidden_size
    H2 = H // 2
    n_classes = 4
    topk = 2

    key = jax.random.PRNGKey(0)
    ks = jax.random.split(key, 10)
    rgb = jax.random.normal(ks[0], (B, C, Dr), jnp.float32)
    emg = jax.random.normal(ks[1], (B, C, De), jnp.float32)

    params = {
        'wr': 0.1 * jax.random.normal(ks[2], (Dr, H), jnp.float32),
        'we': 0.1 * jax.random.normal(ks[3], (De, H), jnp.float32),
        'bf': 0.1 * jax.random.normal(ks[4], (1, H), jnp.float32),
        'q':  0.1 * jax.random.normal(ks[5], (1, H), jnp.float32),
        'w1': 0.1 * jax.random.normal(ks[6], (H, H2), jnp.float32),
        'b1': 0.1 * jax.random.normal(ks[7], (1, H2), jnp.float32),
        'w2': 0.1 * jax.random.normal(ks[8], (H2, n_classes), jnp.float32),
        'b2': 0.1 * jax.random.normal(ks[9], (1, n_classes), jnp.float32),
    }

    # Default path: bf16 MXU operands, f32 accumulate / attention math.
    logits_bf16 = fusion_classifier_attention(rgb, emg, params, topk)
    logits_bf16 = jax.block_until_ready(logits_bf16)

    # Full-f32 path for a tight correctness check against the reference.
    logits_f32 = fusion_classifier_attention(rgb, emg, params, topk,
                                             mxu_dtype=jnp.float32)
    logits_f32 = jax.block_until_ready(logits_f32)

    ref = reference_forward(rgb, emg, params, topk)
    assert logits_f32.shape == (B, n_classes), logits_f32.shape
    assert logits_bf16.shape == (B, n_classes), logits_bf16.shape
    assert jnp.allclose(logits_f32, ref, atol=1e-2, rtol=1e-2), (logits_f32, ref)
    assert jnp.allclose(logits_bf16, ref, atol=5e-2, rtol=5e-2), (logits_bf16, ref)
    print("KERNEL_OK")
</pallas_src>

<mosaic_0001>
module attributes {stable_mosaic.version = 11 : i64} {
  func.func @fusion_classifier_attention_kernel(%arg0: i32, %arg1: memref<16x16xbf16, #tpu.memory_space<vmem>>, %arg2: memref<16x16xbf16, #tpu.memory_space<vmem>>, %arg3: memref<16x128xbf16, #tpu.memory_space<vmem>>, %arg4: memref<16x128xbf16, #tpu.memory_space<vmem>>, %arg5: memref<1x128xf32, #tpu.memory_space<vmem>>, %arg6: memref<128x1xf32, #tpu.memory_space<vmem>>, %arg7: memref<128x128xbf16, #tpu.memory_space<vmem>>, %arg8: memref<1x128xf32, #tpu.memory_space<vmem>>, %arg9: memref<128x128xbf16, #tpu.memory_space<vmem>>, %arg10: memref<1x128xf32, #tpu.memory_space<vmem>>, %arg11: memref<2x128xf32, #tpu.memory_space<vmem>>) attributes {dimension_semantics = [#tpu.dimension_semantics<parallel>], iteration_bounds = array<i64: 1>, scalar_prefetch = 0 : i64, scratch_operands = 0 : i64, tpu.core_type = #tpu.core_type<tc>, window_params = [{transform_indices = @transform_0, window_bounds = array<i64: 16, 16>}, {transform_indices = @transform_1, window_bounds = array<i64: 16, 16>}, {pipeline_mode = #tpu.pipeline_mode<synchronous>, transform_indices = @transform_2, window_bounds = array<i64: 16, 128>}, {pipeline_mode = #tpu.pipeline_mode<synchronous>, transform_indices = @transform_3, window_bounds = array<i64: 16, 128>}, {pipeline_mode = #tpu.pipeline_mode<synchronous>, transform_indices = @transform_4, window_bounds = array<i64: 1, 128>}, {pipeline_mode = #tpu.pipeline_mode<synchronous>, transform_indices = @transform_5, window_bounds = array<i64: 128, 1>}, {pipeline_mode = #tpu.pipeline_mode<synchronous>, transform_indices = @transform_6, window_bounds = array<i64: 128, 128>}, {pipeline_mode = #tpu.pipeline_mode<synchronous>, transform_indices = @transform_7, window_bounds = array<i64: 1, 128>}, {pipeline_mode = #tpu.pipeline_mode<synchronous>, transform_indices = @transform_8, window_bounds = array<i64: 128, 128>}, {pipeline_mode = #tpu.pipeline_mode<synchronous>, transform_indices = @transform_9, window_bounds = array<i64: 1, 128>}, {transform_indices = @transform_10, window_bounds = array<i64: 2, 128>}]} {
    %c0 = arith.constant 0 : index
    %c0_0 = arith.constant 0 : index
    %0 = vector.load %arg1[%c0, %c0_0] : memref<16x16xbf16, #tpu.memory_space<vmem>>, vector<16x16xbf16>
    %c0_1 = arith.constant 0 : index
    %c0_2 = arith.constant 0 : index
    %1 = vector.load %arg3[%c0_1, %c0_2] : memref<16x128xbf16, #tpu.memory_space<vmem>>, vector<16x128xbf16>
    %cst = arith.constant dense<0.000000e+00> : vector<16x128xf32>
    %2 = tpu.matmul %0, %1, %cst {dimension_numbers = #tpu.dot_dimension_numbers<[1], [0], [0], [1], [0, 0, 1, 1], [], []>} : vector<16x16xbf16>, vector<16x128xbf16>, vector<16x128xf32> -> vector<16x128xf32>
    %c0_3 = arith.constant 0 : index
    %c0_4 = arith.constant 0 : index
    %3 = vector.load %arg2[%c0_3, %c0_4] : memref<16x16xbf16, #tpu.memory_space<vmem>>, vector<16x16xbf16>
    %c0_5 = arith.constant 0 : index
    %c0_6 = arith.constant 0 : index
    %4 = vector.load %arg4[%c0_5, %c0_6] : memref<16x128xbf16, #tpu.memory_space<vmem>>, vector<16x128xbf16>
    %cst_7 = arith.constant dense<0.000000e+00> : vector<16x128xf32>
    %5 = tpu.matmul %3, %4, %cst_7 {dimension_numbers = #tpu.dot_dimension_numbers<[1], [0], [0], [1], [0, 0, 1, 1], [], []>} : vector<16x16xbf16>, vector<16x128xbf16>, vector<16x128xf32> -> vector<16x128xf32>
    %6 = arith.addf %2, %5 : vector<16x128xf32>
    %c0_8 = arith.constant 0 : index
    %c0_9 = arith.constant 0 : index
    %7 = vector.load %arg5[%c0_8, %c0_9] : memref<1x128xf32, #tpu.memory_space<vmem>>, vector<1x128xf32>
    %8 = vector.broadcast %7 : vector<1x128xf32> to vector<16x128xf32>
    %9 = arith.addf %6, %8 : vector<16x128xf32>
    %cst_10 = arith.constant 0.000000e+00 : f32
    %10 = vector.broadcast %cst_10 : f32 to vector<16x128xf32>
    %11 = arith.maximumf %9, %10 : vector<16x128xf32>
    %12 = vector.shape_cast %11 : vector<16x128xf32> to vector<2x8x128xf32>
    %c0_11 = arith.constant 0 : index
    %c0_12 = arith.constant 0 : index
    %13 = vector.load %arg6[%c0_11, %c0_12] : memref<128x1xf32, #tpu.memory_space<vmem>>, vector<128x1xf32>
    %cst_13 = arith.constant dense<0.000000e+00> : vector<16x1xf32>
    %14 = tpu.matmul %11, %13, %cst_13 {dimension_numbers = #tpu.dot_dimension_numbers<[1], [0], [0], [1], [0, 0, 1, 1], [], []>} : vector<16x128xf32>, vector<128x1xf32>, vector<16x1xf32> -> vector<16x1xf32>
    %15 = vector.shape_cast %14 : vector<16x1xf32> to vector<2x8x1xf32>
    %cst_14 = arith.constant 0.176776692 : f32
    %16 = vector.broadcast %cst_14 : f32 to vector<2x8x1xf32>
    %17 = arith.mulf %15, %16 : vector<2x8x1xf32>
    %false = arith.constant false
    %18 = vector.broadcast %false : i1 to vector<2x8x1xi1>
    %cst_15 = arith.constant dense<0xFF800000> : vector<2x1xf32>
    %19 = vector.multi_reduction <maximumf>, %17, %cst_15 [1] : vector<2x8x1xf32> to vector<2x1xf32>
    %20 = vector.shape_cast %19 : vector<2x1xf32> to vector<2x1x1xf32>
    %21 = vector.broadcast %20 : vector<2x1x1xf32> to vector<2x8x1xf32>
    %22 = arith.cmpf oeq, %17, %21 : vector<2x8x1xf32>
    %cst_16 = arith.constant dense<true> : vector<2x8x1xi1>
    %23 = arith.xori %18, %cst_16 : vector<2x8x1xi1>
    %24 = arith.andi %22, %23 : vector<2x8x1xi1>
    %25 = arith.ori %18, %24 : vector<2x8x1xi1>
    %cst_17 = arith.constant -1.000000e+30 : f32
    %26 = vector.broadcast %cst_17 : f32 to vector<2x8x1xf32>
    %27 = arith.select %24, %26, %17 : vector<2x8x1xi1>, vector<2x8x1xf32>
    %cst_18 = arith.constant dense<0xFF800000> : vector<2x1xf32>
    %28 = vector.multi_reduction <maximumf>, %27, %cst_18 [1] : vector<2x8x1xf32> to vector<2x1xf32>
    %29 = vector.shape_cast %28 : vector<2x1xf32> to vector<2x1x1xf32>
    %30 = vector.broadcast %29 : vector<2x1x1xf32> to vector<2x8x1xf32>
    %31 = arith.cmpf oeq, %27, %30 : vector<2x8x1xf32>
    %cst_19 = arith.constant dense<true> : vector<2x8x1xi1>
    %32 = arith.xori %25, %cst_19 : vector<2x8x1xi1>
    %33 = arith.andi %31, %32 : vector<2x8x1xi1>
    %34 = arith.ori %25, %33 : vector<2x8x1xi1>
    %cst_20 = arith.constant -1.000000e+30 : f32
    %35 = vector.broadcast %cst_20 : f32 to vector<2x8x1xf32>
    %36 = arith.select %34, %17, %35 : vector<2x8x1xi1>, vector<2x8x1xf32>
    %cst_21 = arith.constant dense<0xFF800000> : vector<2x1xf32>
    %37 = vector.multi_reduction <maximumf>, %36, %cst_21 [1] : vector<2x8x1xf32> to vector<2x1xf32>
    %38 = vector.shape_cast %37 : vector<2x1xf32> to vector<2x1x1xf32>
    %39 = vector.broadcast %38 : vector<2x1x1xf32> to vector<2x8x1xf32>
    %40 = arith.subf %36, %39 : vector<2x8x1xf32>
    %41 = math.exp %40 : vector<2x8x1xf32>
    %cst_22 = arith.constant dense<0.000000e+00> : vector<2x1xf32>
    %42 = vector.multi_reduction <add>, %41, %cst_22 [1] : vector<2x8x1xf32> to vector<2x1xf32>
    %43 = vector.shape_cast %42 : vector<2x1xf32> to vector<2x1x1xf32>
    %44 = vector.broadcast %43 : vector<2x1x1xf32> to vector<2x8x1xf32>
    %45 = arith.divf %41, %44 : vector<2x8x1xf32>
    %46 = vector.broadcast %45 : vector<2x8x1xf32> to vector<2x8x128xf32>
    %47 = arith.mulf %46, %12 : vector<2x8x128xf32>
    %cst_23 = arith.constant dense<0.000000e+00> : vector<2x128xf32>
    %48 = vector.multi_reduction <add>, %47, %cst_23 [1] : vector<2x8x128xf32> to vector<2x128xf32>
    %49 = arith.truncf %48 : vector<2x128xf32> to vector<2x128xbf16>
    %c0_24 = arith.constant 0 : index
    %c0_25 = arith.constant 0 : index
    %50 = vector.load %arg7[%c0_24, %c0_25] : memref<128x128xbf16, #tpu.memory_space<vmem>>, vector<128x128xbf16>
    %cst_26 = arith.constant dense<0.000000e+00> : vector<2x128xf32>
    %51 = tpu.matmul %49, %50, %cst_26 {dimension_numbers = #tpu.dot_dimension_numbers<[1], [0], [0], [1], [0, 0, 1, 1], [], []>} : vector<2x128xbf16>, vector<128x128xbf16>, vector<2x128xf32> -> vector<2x128xf32>
    %c0_27 = arith.constant 0 : index
    %c0_28 = arith.constant 0 : index
    %52 = vector.load %arg8[%c0_27, %c0_28] : memref<1x128xf32, #tpu.memory_space<vmem>>, vector<1x128xf32>
    %53 = vector.broadcast %52 : vector<1x128xf32> to vector<2x128xf32>
    %54 = arith.addf %51, %53 : vector<2x128xf32>
    %cst_29 = arith.constant 0.000000e+00 : f32
    %55 = vector.broadcast %cst_29 : f32 to vector<2x128xf32>
    %56 = arith.maximumf %54, %55 : vector<2x128xf32>
    %57 = arith.truncf %56 : vector<2x128xf32> to vector<2x128xbf16>
    %c0_30 = arith.constant 0 : index
    %c0_31 = arith.constant 0 : index
    %58 = vector.load %arg9[%c0_30, %c0_31] : memref<128x128xbf16, #tpu.memory_space<vmem>>, vector<128x128xbf16>
    %cst_32 = arith.constant dense<0.000000e+00> : vector<2x128xf32>
    %59 = tpu.matmul %57, %58, %cst_32 {dimension_numbers = #tpu.dot_dimension_numbers<[1], [0], [0], [1], [0, 0, 1, 1], [], []>} : vector<2x128xbf16>, vector<128x128xbf16>, vector<2x128xf32> -> vector<2x128xf32>
    %c0_33 = arith.constant 0 : index
    %c0_34 = arith.constant 0 : index
    %60 = vector.load %arg10[%c0_33, %c0_34] : memref<1x128xf32, #tpu.memory_space<vmem>>, vector<1x128xf32>
    %61 = vector.broadcast %60 : vector<1x128xf32> to vector<2x128xf32>
    %62 = arith.addf %59, %61 : vector<2x128xf32>
    %c0_35 = arith.constant 0 : index
    %c0_36 = arith.constant 0 : index
    %63 = vector.load %arg11[%c0_35, %c0_36] : memref<2x128xf32, #tpu.memory_space<vmem>>, vector<2x128xf32>
    tpu.vector_store %arg11[%c0_35, %c0_36], %62 {strides = array<i32>} : memref<2x128xf32, #tpu.memory_space<vmem>>, vector<2x128xf32>,
    return
  }
  func.func @transform_0(%arg0: i32) -> (i32, i32) {
    %c0_i32 = arith.constant 0 : i32
    %c0_i32_0 = arith.constant 0 : i32
    return %arg0, %c0_i32 : i32, i32
  }
  func.func @transform_1(%arg0: i32) -> (i32, i32) {
    %c0_i32 = arith.constant 0 : i32
    %c0_i32_0 = arith.constant 0 : i32
    return %arg0, %c0_i32 : i32, i32
  }
  func.func @transform_2(%arg0: i32) -> (i32, i32) {
    %c0_i32 = arith.constant 0 : i32
    %c0_i32_0 = arith.constant 0 : i32
    %c0_i32_1 = arith.constant 0 : i32
    return %c0_i32, %c0_i32_0 : i32, i32
  }
  func.func @transform_3(%arg0: i32) -> (i32, i32) {
    %c0_i32 = arith.constant 0 : i32
    %c0_i32_0 = arith.constant 0 : i32
    %c0_i32_1 = arith.constant 0 : i32
    return %c0_i32, %c0_i32_0 : i32, i32
  }
  func.func @transform_4(%arg0: i32) -> (i32, i32) {
    %c0_i32 = arith.constant 0 : i32
    %c0_i32_0 = arith.constant 0 : i32
    %c0_i32_1 = arith.constant 0 : i32
    return %c0_i32, %c0_i32_0 : i32, i32
  }
  func.func @transform_5(%arg0: i32) -> (i32, i32) {
    %c0_i32 = arith.constant 0 : i32
    %c0_i32_0 = arith.constant 0 : i32
    %c0_i32_1 = arith.constant 0 : i32
    return %c0_i32, %c0_i32_0 : i32, i32
  }
  func.func @transform_6(%arg0: i32) -> (i32, i32) {
    %c0_i32 = arith.constant 0 : i32
    %c0_i32_0 = arith.constant 0 : i32
    %c0_i32_1 = arith.constant 0 : i32
    return %c0_i32, %c0_i32_0 : i32, i32
  }
  func.func @transform_7(%arg0: i32) -> (i32, i32) {
    %c0_i32 = arith.constant 0 : i32
    %c0_i32_0 = arith.constant 0 : i32
    %c0_i32_1 = arith.constant 0 : i32
    return %c0_i32, %c0_i32_0 : i32, i32
  }
  func.func @transform_8(%arg0: i32) -> (i32, i32) {
    %c0_i32 = arith.constant 0 : i32
    %c0_i32_0 = arith.constant 0 : i32
    %c0_i32_1 = arith.constant 0 : i32
    return %c0_i32, %c0_i32_0 : i32, i32
  }
  func.func @transform_9(%arg0: i32) -> (i32, i32) {
    %c0_i32 = arith.constant 0 : i32
    %c0_i32_0 = arith.constant 0 : i32
    %c0_i32_1 = arith.constant 0 : i32
    return %c0_i32, %c0_i32_0 : i32, i32
  }
  func.func @transform_10(%arg0: i32) -> (i32, i32) {
    %c0_i32 = arith.constant 0 : i32
    %c0_i32_0 = arith.constant 0 : i32
    return %arg0, %c0_i32 : i32, i32
  }
}

</mosaic_0001>

<llo_original>
// kernel: tpu_custom_call.1
$region0: #{tpu_custom_call.1}
  #allocation0 [shape = 'u32[]', space=smem, size = 0x4, offset = 0x4, fixed_abs, tag = 'smem constant byte address 0x4 - core index']
  #allocation1 [shape = 'u32[144,128]{1,0:T(1,128)}', space=vmem, size = 0x12000, scoped, tag = 'internal scratch']
  %s0 = inlined_call_operand.hbm [shape: bf16[16,16], index: 0, kind: input, shape index: {}]
  %s1 = inlined_call_operand.hbm [shape: bf16[16,16], index: 1, kind: input, shape index: {}]
  %s2 = inlined_call_operand.hbm [shape: bf16[16,128], index: 2, kind: input, shape index: {}]
  %s3 = inlined_call_operand.hbm [shape: bf16[16,128], index: 3, kind: input, shape index: {}]
  %s4 = inlined_call_operand.vmem [shape: f32[1,128], index: 4, kind: input, shape index: {}]
  %s5 = inlined_call_operand.vmem [shape: f32[128,1], index: 5, kind: input, shape index: {}]
  %s6 = inlined_call_operand.vmem [shape: bf16[128,128], index: 6, kind: input, shape index: {}]
  %s7 = inlined_call_operand.vmem [shape: f32[1,128], index: 7, kind: input, shape index: {}]
  %s8 = inlined_call_operand.vmem [shape: bf16[128,128], index: 8, kind: input, shape index: {}]
  %s9 = inlined_call_operand.vmem [shape: f32[1,128], index: 9, kind: input, shape index: {}]
  %s10 = inlined_call_operand.hbm [shape: f32[2,128], index: 10, kind: output, shape index: {}]
  %s11 = sld [smem:[#allocation0]]
  $region66: #{tpu_custom_call.1} parent=0
    _
  %s13 = ssub.s32 1, %s11
  %s14 = scalar_select 0, %s13, %s11
  $region1: #{tpu_custom_call.1} parent=0
    #allocation2 [shape = 'u8[4096]{0}', space=vmem, size = 0x1000, scoped, tag = 'input window, operand 0, single buffered']
    #allocation3 [shape = 's32[1]{0}', space=sflag, size = 0x4, scoped, tag = 'scoped memory for tpu_custom_call.1']
    #allocation4 [shape = 's32[1]{0}', space=sflag, size = 0x4, scoped, tag = 'scoped memory for tpu_custom_call.1']
    #allocation5 [shape = 'u8[4096]{0}', space=vmem, size = 0x1000, scoped, tag = 'input window, operand 1, single buffered']
    #allocation6 [shape = 's32[1]{0}', space=sflag, size = 0x4, scoped, tag = 'scoped memory for tpu_custom_call.1']
    #allocation7 [shape = 'u8[4096]{0}', space=vmem, size = 0x1000, scoped, tag = 'input window, operand 2, single buffered']
    #allocation8 [shape = 'u8[4096]{0}', space=vmem, size = 0x1000, scoped, tag = 'input window, operand 3, single buffered']
    #allocation9 [shape = 's32[1]{0}', space=sflag, size = 0x4, scoped, tag = 'scoped memory for tpu_custom_call.1']
    #allocation10 [shape = 'u8[1024]{0}', space=vmem, size = 0x400, scoped, tag = 'output window, operand 0, single buffered']
    %15 = vsyncpa [#allocation3], 0
    %16 = vsyncpa [#allocation6], 0
    %17 = vsyncpa [#allocation9], 0
    %18 = vsyncpa [#allocation4], 0
    // Predicated region
    $region2: #{tpu_custom_call.1} parent=1 // pred_check
      _
    $region3: #{tpu_custom_call.1} parent=1 // pred_check_branch
      %20 = sbr.rel (0) target = $region5
    $region4: #{tpu_custom_call.1} parent=1 // pred_region
      %s22 = ssub.s32 128, 128
      %23 = vsyncadd [#allocation3], %s22
      %s24 = sshll.u32 [#allocation2], 4
      %s25 = int_to_ptr.vmem [resolvable:$true] %s24
      %30 = dma.hbm_to_vmem [thread:$0]  %s0, 128, %s25, [#allocation3], 64, 64, 4
    $region5: #{tpu_custom_call.1} parent=1 // pred_fallthru
      _
    // Predicated region
    $region6: #{tpu_custom_call.1} parent=1 // pred_check
      _
    $region7: #{tpu_custom_call.1} parent=1 // pred_check_branch
      %32 = sbr.rel (0) target = $region9
    $region8: #{tpu_custom_call.1} parent=1 // pred_region
      %s34 = ssub.s32 128, 128
      %35 = vsyncadd [#allocation6], %s34
      %s36 = sshll.u32 [#allocation5], 4
      %s37 = int_to_ptr.vmem [resolvable:$true] %s36
      %42 = dma.hbm_to_vmem [thread:$0]  %s1, 128, %s37, [#allocation6], 64, 64, 4
    $region9: #{tpu_custom_call.1} parent=1 // pred_fallthru
      _
    // Predicated region
    $region10: #{tpu_custom_call.1} parent=1 // pred_check
      _
    $region11: #{tpu_custom_call.1} parent=1 // pred_check_branch
      %44 = sbr.rel (0) target = $region13
    $region12: #{tpu_custom_call.1} parent=1 // pred_region
      %s46 = ssub.s32 128, 128
      %47 = vsyncadd [#allocation6], %s46
      %s48 = sshll.u32 [#allocation7], 4
      %s49 = int_to_ptr.vmem [resolvable:$true] %s48
      %54 = dma.hbm_to_vmem [thread:$0]  %s2, 128, %s49, [#allocation6], 64, 64, 4
    $region13: #{tpu_custom_call.1} parent=1 // pred_fallthru
      _
    // Predicated region
    $region14: #{tpu_custom_call.1} parent=1 // pred_check
      _
    $region15: #{tpu_custom_call.1} parent=1 // pred_check_branch
      %56 = sbr.rel (0) target = $region17
    $region16: #{tpu_custom_call.1} parent=1 // pred_region
      %s58 = ssub.s32 128, 128
      %59 = vsyncadd [#allocation9], %s58
      %s60 = sshll.u32 [#allocation8], 4
      %s61 = int_to_ptr.vmem [resolvable:$true] %s60
      %66 = dma.hbm_to_vmem [thread:$0]  %s3, 128, %s61, [#allocation9], 64, 64, 4
    $region17: #{tpu_custom_call.1} parent=1 // pred_fallthru
      _
    // Predicated region
    $region18: #{tpu_custom_call.1} parent=1 // pred_check
      _
    $region19: #{tpu_custom_call.1} parent=1 // pred_check_branch
      %68 = sbr.rel (0) target = $region21
    $region20: #{tpu_custom_call.1} parent=1 // pred_region
      _
    $region21: #{tpu_custom_call.1} parent=1 // pred_fallthru
      _
    // Predicated region
    $region22: #{tpu_custom_call.1} parent=1 // pred_check
      _
    $region23: #{tpu_custom_call.1} parent=1 // pred_check_branch
      %70 = sbr.rel (0) target = $region25
    $region24: #{tpu_custom_call.1} parent=1 // pred_region
      _
    $region25: #{tpu_custom_call.1} parent=1 // pred_fallthru
      _
    // Predicated region
    $region26: #{tpu_custom_call.1} parent=1 // pred_check
      _
    $region27: #{tpu_custom_call.1} parent=1 // pred_check_branch
      %72 = sbr.rel (0) target = $region29
    $region28: #{tpu_custom_call.1} parent=1 // pred_region
      _
    $region29: #{tpu_custom_call.1} parent=1 // pred_fallthru
      _
    // Predicated region
    $region30: #{tpu_custom_call.1} parent=1 // pred_check
      _
    $region31: #{tpu_custom_call.1} parent=1 // pred_check_branch
      %74 = sbr.rel (0) target = $region33
    $region32: #{tpu_custom_call.1} parent=1 // pred_region
      _
    $region33: #{tpu_custom_call.1} parent=1 // pred_fallthru
      _
    // Predicated region
    $region34: #{tpu_custom_call.1} parent=1 // pred_check
      _
    $region35: #{tpu_custom_call.1} parent=1 // pred_check_branch
      %76 = sbr.rel (0) target = $region37
    $region36: #{tpu_custom_call.1} parent=1 // pred_region
      _
    $region37: #{tpu_custom_call.1} parent=1 // pred_fallthru
      _
    // Predicated region
    $region38: #{tpu_custom_call.1} parent=1 // pred_check
      _
    $region39: #{tpu_custom_call.1} parent=1 // pred_check_branch
      %78 = sbr.rel (0) target = $region41
    $region40: #{tpu_custom_call.1} parent=1 // pred_region
      _
    $region41: #{tpu_custom_call.1} parent=1 // pred_fallthru
      _
    // Predicated region
    $region42: #{tpu_custom_call.1} parent=1 // pred_check
      _
    $region43: #{tpu_custom_call.1} parent=1 // pred_check_branch
      %80 = sbr.rel (0) target = $region45
    $region44: #{tpu_custom_call.1} parent=1 // pred_region
      %81 = dma.done [#allocation3], 128
    $region45: #{tpu_custom_call.1} parent=1 // pred_fallthru
      _
    // Predicated region
    $region46: #{tpu_custom_call.1} parent=1 // pred_check
      _
    $region47: #{tpu_custom_call.1} parent=1 // pred_check_branch
      %83 = sbr.rel (0) target = $region49
    $region48: #{tpu_custom_call.1} parent=1 // pred_region
      %84 = dma.done [#allocation6], 128
    $region49: #{tpu_custom_call.1} parent=1 // pred_fallthru
      _
    // Predicated region
    $region50: #{tpu_custom_call.1} parent=1 // pred_check
      _
    $region51: #{tpu_custom_call.1} parent=1 // pred_check_branch
      %86 = sbr.rel (0) target = $region53
    $region52: #{tpu_custom_call.1} parent=1 // pred_region
      %87 = dma.done [#allocation6], 128
    $region53: #{tpu_custom_call.1} parent=1 // pred_fallthru
      _
    // Predicated region
    $region54: #{tpu_custom_call.1} parent=1 // pred_check
      _
    $region55: #{tpu_custom_call.1} parent=1 // pred_check_branch
      %89 = sbr.rel (0) target = $region57
    $region56: #{tpu_custom_call.1} parent=1 // pred_region
      %90 = dma.done [#allocation9], 128
    $region57: #{tpu_custom_call.1} parent=1 // pred_fallthru
      _
    %v92 = vld [vmem:[#allocation2] sm:$0xf]
    %v93 = vld [vmem:[#allocation2 + $0x4] sm:$0xf]
    %v94 = vld [vmem:[#allocation7] sm:$0xf]
    %v95 = vld [vmem:[#allocation7 + $0x4] sm:$0xf]
    %v96 = vld [vmem:[#allocation5] sm:$0xf]
    %v97 = vld [vmem:[#allocation5 + $0x4] sm:$0xf]
    %v98 = vld [vmem:[#allocation8] sm:$0xf]
    %v99 = vld [vmem:[#allocation8 + $0x4] sm:$0xf]
    %v102 = vunpack.c.l.b16 %v96
    %v103 = vunpack.c.l.b16 %v97
    %v104 = vpack.c.b16 %v103, %v102
    %v107 = vunpack.c.l.b16 %v98
    %v108 = vunpack.c.l.b16 %v99
    %v109 = vpack.c.b16 %v108, %v107
    %vm111 = vcmask 130048
    %v113 = vsel %vm111, %v104, 0
    %115 = vmatprep.subr.bf16.mxu0 0
    %116 = vmatpush1.bf16.msra.mxu0 0
    %117 = vmatprep.subr.bf16.mxu0 0
    %118 = vmatpush1.bf16.msra.mxu0 0
    %119 = vmatprep.subr.bf16.mxu0 0
    %120 = vmatpush1.bf16.msra.mxu0 0
    %121 = vmatprep.subr.bf16.mxu0 0
    %122 = vmatpush1.bf16.msra.mxu0 0
    %123 = vmatprep.subr.bf16.mxu0 0
    %124 = vmatpush1.bf16.msra.mxu0 0
    %125 = vmatprep.subr.bf16.mxu0 0
    %126 = vmatpush1.bf16.msra.mxu0 0
    %127 = vmatprep.subr.bf16.mxu0 0
    %128 = vmatpush1.bf16.msra.mxu0 0
    %129 = vmatprep.subr.bf16.mxu0 0
    %130 = vmatpush1.bf16.msra.mxu0 %v109
    %131 = vmatprep.subr.bf16.mxu0 0
    %132 = vmatpush2.bf16.msra.mxu0 0
    %133 = vmatprep.subr.bf16.mxu0 0
    %134 = vmatpush2.bf16.msra.mxu0 0
    %135 = vmatprep.subr.bf16.mxu0 0
    %136 = vmatpush2.bf16.msra.mxu0 0
    %137 = vmatprep.subr.bf16.mxu0 0
    %138 = vmatpush2.bf16.msra.mxu0 0
    %139 = vmatprep.subr.bf16.mxu0 0
    %140 = vmatpush2.bf16.msra.mxu0 0
    %141 = vmatprep.subr.bf16.mxu0 0
    %142 = vmatpush2.bf16.msra.mxu0 0
    %143 = vmatprep.subr.bf16.mxu0 0
    %144 = vmatpush2.bf16.msra.mxu0 0
    %145 = vmatprep.subr.bf16.mxu0 0
    %146 = vmatpush2.bf16.msra.mxu0 0
    %147 = vmatprep.mubr.bf16.mxu0 0
    %148 = vmatmul.mubr.bf16.gmra.mxu0 %v113
    %v149 = vpop.f32.mrf.mxu0
    %v150 = vadd.f32 0.0, %v149
    %v151 = vpop.f32.mrf.mxu0
    %v152 = vpop.f32.mrf.mxu0
    %v153 = vadd.f32 0.0, %v152
    %v154 = vpop.f32.mrf.mxu0
    %155 = vdwg.mxu0
    %v158 = vunpack.c.l.b16 %v92
    %v159 = vunpack.c.l.b16 %v93
    %v160 = vpack.c.b16 %v159, %v158
    %v163 = vunpack.c.l.b16 %v94
    %v164 = vunpack.c.l.b16 %v95
    %v165 = vpack.c.b16 %v164, %v163
    %v168 = vsel %vm111, %v160, 0
    %170 = vmatprep.subr.bf16.mxu0 0
    %171 = vmatpush1.bf16.msra.mxu0 0
    %172 = vmatprep.subr.bf16.mxu0 0
    %173 = vmatpush1.bf16.msra.mxu0 0
    %174 = vmatprep.subr.bf16.mxu0 0
    %175 = vmatpush1.bf16.msra.mxu0 0
    %176 = vmatprep.subr.bf16.mxu0 0
    %177 = vmatpush1.bf16.msra.mxu0 0
    %178 = vmatprep.subr.bf16.mxu0 0
    %179 = vmatpush1.bf16.msra.mxu0 0
    %180 = vmatprep.subr.bf16.mxu0 0
    %181 = vmatpush1.bf16.msra.mxu0 0
    %182 = vmatprep.subr.bf16.mxu0 0
    %183 = vmatpush1.bf16.msra.mxu0 0
    %184 = vmatprep.subr.bf16.mxu0 0
    %185 = vmatpush1.bf16.msra.mxu0 %v165
    %186 = vmatprep.subr.bf16.mxu0 0
    %187 = vmatpush2.bf16.msra.mxu0 0
    %188 = vmatprep.subr.bf16.mxu0 0
    %189 = vmatpush2.bf16.msra.mxu0 0
    %190 = vmatprep.subr.bf16.mxu0 0
    %191 = vmatpush2.bf16.msra.mxu0 0
    %192 = vmatprep.subr.bf16.mxu0 0
    %193 = vmatpush2.bf16.msra.mxu0 0
    %194 = vmatprep.subr.bf16.mxu0 0
    %195 = vmatpush2.bf16.msra.mxu0 0
    %196 = vmatprep.subr.bf16.mxu0 0
    %197 = vmatpush2.bf16.msra.mxu0 0
    %198 = vmatprep.subr.bf16.mxu0 0
    %199 = vmatpush2.bf16.msra.mxu0 0
    %200 = vmatprep.subr.bf16.mxu0 0
    %201 = vmatpush2.bf16.msra.mxu0 0
    %202 = vmatprep.mubr.bf16.mxu0 0
    %203 = vmatmul.mubr.bf16.gmra.mxu0 %v168
    %v204 = vpop.f32.mrf.mxu0
    %v205 = vadd.f32 %v150, %v204
    %v206 = vpop.f32.mrf.mxu0
    %v207 = vpop.f32.mrf.mxu0
    %v208 = vadd.f32 %v153, %v207
    %v209 = vpop.f32.mrf.mxu0
    %210 = vdwg.mxu0
    %v211 = vld [vmem:[%s4] sm:$0x1]
    %v213 = vlaneseq
    %v214 = vshrl.u32 %v213, 7
    %v215 = vsub.s32 0, %v214
    %v216 = vrot.slane %v211, %v215
    %v218 = vadd.f32 %v205, %v216
    %v219 = vadd.f32 %v208, %v216
    %v220 = vmax.f32 %v218, 0.0
    %v221 = vmax.f32 %v219, 0.0
    %v222 = vld [vmem:[%s5] sm:$0xff]
    %v223 = vld [vmem:[%s5 + $0x8] sm:$0xff]
    %v224 = vld [vmem:[%s5 + $0x10] sm:$0xff]
    %v225 = vld [vmem:[%s5 + $0x18] sm:$0xff]
    %v226 = vld [vmem:[%s5 + $0x20] sm:$0xff]
    %v227 = vld [vmem:[%s5 + $0x28] sm:$0xff]
    %v228 = vld [vmem:[%s5 + $0x30] sm:$0xff]
    %v229 = vld [vmem:[%s5 + $0x38] sm:$0xff]
    %v230 = vld [vmem:[%s5 + $0x40] sm:$0xff]
    %v231 = vld [vmem:[%s5 + $0x48] sm:$0xff]
    %v232 = vld [vmem:[%s5 + $0x50] sm:$0xff]
    %v233 = vld [vmem:[%s5 + $0x58] sm:$0xff]
    %v234 = vld [vmem:[%s5 + $0x60] sm:$0xff]
    %v235 = vld [vmem:[%s5 + $0x68] sm:$0xff]
    %v236 = vld [vmem:[%s5 + $0x70] sm:$0xff]
    %v237 = vld [vmem:[%s5 + $0x78] sm:$0xff]
    %238 = vmatprep.subr.mxu0 0.0
    %239 = vmatpush1.msra.mxu0 %v237
    %240 = vmatprep.subr.mxu0 0.0
    %241 = vmatpush1.msra.mxu0 %v236
    %242 = vmatprep.subr.mxu0 0.0
    %243 = vmatpush1.msra.mxu0 %v235
    %244 = vmatprep.subr.mxu0 0.0
    %245 = vmatpush1.msra.mxu0 %v234
    %246 = vmatprep.subr.mxu0 0.0
    %247 = vmatpush1.msra.mxu0 %v233
    %248 = vmatprep.subr.mxu0 0.0
    %249 = vmatpush1.msra.mxu0 %v232
    %250 = vmatprep.subr.mxu0 0.0
    %251 = vmatpush1.msra.mxu0 %v231
    %252 = vmatprep.subr.mxu0 0.0
    %253 = vmatpush1.msra.mxu0 %v230
    %254 = vmatprep.subr.mxu0 0.0
    %255 = vmatpush1.msra.mxu0 %v229
    %256 = vmatprep.subr.mxu0 0.0
    %257 = vmatpush1.msra.mxu0 %v228
    %258 = vmatprep.subr.mxu0 0.0
    %259 = vmatpush1.msra.mxu0 %v227
    %260 = vmatprep.subr.mxu0 0.0
    %261 = vmatpush1.msra.mxu0 %v226
    %262 = vmatprep.subr.mxu0 0.0
    %263 = vmatpush1.msra.mxu0 %v225
    %264 = vmatprep.subr.mxu0 0.0
    %265 = vmatpush1.msra.mxu0 %v224
    %266 = vmatprep.subr.mxu0 0.0
    %267 = vmatpush1.msra.mxu0 %v223
    %268 = vmatprep.subr.mxu0 0.0
    %269 = vmatpush1.msra.mxu0 %v222
    %270 = vmatprep.subr.mxu0 0.0
    %271 = vmatpush2.msra.mxu0 0.0
    %272 = vmatprep.subr.mxu0 0.0
    %273 = vmatpush2.msra.mxu0 0.0
    %274 = vmatprep.subr.mxu0 0.0
    %275 = vmatpush2.msra.mxu0 0.0
    %276 = vmatprep.subr.mxu0 0.0
    %277 = vmatpush2.msra.mxu0 0.0
    %278 = vmatprep.subr.mxu0 0.0
    %279 = vmatpush2.msra.mxu0 0.0
    %280 = vmatprep.subr.mxu0 0.0
    %281 = vmatpush2.msra.mxu0 0.0
    %282 = vmatprep.subr.mxu0 0.0
    %283 = vmatpush2.msra.mxu0 0.0
    %284 = vmatprep.subr.mxu0 0.0
    %285 = vmatpush2.msra.mxu0 0.0
    %286 = vmatprep.subr.mxu0 0.0
    %287 = vmatpush2.msra.mxu0 0.0
    %288 = vmatprep.subr.mxu0 0.0
    %289 = vmatpush2.msra.mxu0 0.0
    %290 = vmatprep.subr.mxu0 0.0
    %291 = vmatpush2.msra.mxu0 0.0
    %292 = vmatprep.subr.mxu0 0.0
    %293 = vmatpush2.msra.mxu0 0.0
    %294 = vmatprep.subr.mxu0 0.0
    %295 = vmatpush2.msra.mxu0 0.0
    %296 = vmatprep.subr.mxu0 0.0
    %297 = vmatpush2.msra.mxu0 0.0
    %298 = vmatprep.subr.mxu0 0.0
    %299 = vmatpush2.msra.mxu0 0.0
    %300 = vmatprep.subr.mxu0 0.0
    %301 = vmatpush2.msra.mxu0 0.0
    %302 = vmatprep.mubr.f32.mxu0 0.0
    %303 = vmatmul.mubr.f32.gmra.mxu0 %v220
    %v304 = vpop.f32.mrf.mxu0
    %v305 = vadd.f32 0.0, %v304
    %v306 = vpop.f32.mrf.mxu0
    %307 = vmatprep.mubr.f32.mxu0 0.0
    %308 = vmatmul.mubr.f32.gmra.mxu0 %v221
    %v309 = vpop.f32.mrf.mxu0
    %v310 = vadd.f32 0.0, %v309
    %v311 = vpop.f32.mrf.mxu0
    %312 = vdwg.mxu0
    %v313 = vmul.f32 %v305, 0.17677669
    %v314 = vmul.f32 %v310, 0.17677669
    %vm315 = vcmask 7168
    %v316 = vsel %vm315, %v313, -inf
    %v317 = vrot.slane %v316, 4
    %v318 = vmax.f32 %v316, %v317
    %v319 = vrot.slane %v318, 2
    %v320 = vmax.f32 %v318, %v319
    %v321 = vrot.slane %v320, 1
    %v322 = vmax.f32 %v320, %v321
    %v323 = vsel %vm315, %v314, -inf
    %v324 = vrot.slane %v323, 4
    %v325 = vmax.f32 %v323, %v324
    %v326 = vrot.slane %v325, 2
    %v327 = vmax.f32 %v325, %v326
    %v328 = vrot.slane %v327, 1
    %v329 = vmax.f32 %v327, %v328
    %vm330 = vcmp.eq.f32.partialorder %v313, %v322
    %vm331 = vcmp.eq.f32.partialorder %v314, %v329
    %v332 = vsel %vm330, -1e+30, %v313
    %v333 = vsel %vm331, -1e+30, %v314
    %v334 = vsel %vm315, %v332, -inf
    %v335 = vrot.slane %v334, 4
    %v336 = vmax.f32 %v334, %v335
    %v337 = vrot.slane %v336, 2
    %v338 = vmax.f32 %v336, %v337
    %v339 = vrot.slane %v338, 1
    %v340 = vmax.f32 %v338, %v339
    %v341 = vsel %vm315, %v333, -inf
    %v342 = vrot.slane %v341, 4
    %v343 = vmax.f32 %v341, %v342
    %v344 = vrot.slane %v343, 2
    %v345 = vmax.f32 %v343, %v344
    %v346 = vrot.slane %v345, 1
    %v347 = vmax.f32 %v345, %v346
    %vm348 = vcmp.eq.f32.partialorder %v332, %v340
    %vm349 = vcmp.eq.f32.partialorder %v333, %v347
    %vm350 = vmxor %vm330, 1
    %vm351 = vmxor %vm331, 1
    %vm352 = vmand %vm348, %vm350
    %vm353 = vmand %vm349, %vm351
    %vm354 = vmor %vm330, %vm352
    %vm355 = vmor %vm331, %vm353
    %v356 = vsel %vm354, %v313, -1e+30
    %v357 = vsel %vm355, %v314, -1e+30
    %v358 = vsel %vm315, %v356, -inf
    %v359 = vrot.slane %v358, 4
    %v360 = vmax.f32 %v358, %v359
    %v361 = vrot.slane %v360, 2
    %v362 = vmax.f32 %v360, %v361
    %v363 = vrot.slane %v362, 1
    %v364 = vmax.f32 %v362, %v363
    %v365 = vsel %vm315, %v357, -inf
    %v366 = vrot.slane %v365, 4
    %v367 = vmax.f32 %v365, %v366
    %v368 = vrot.slane %v367, 2
    %v369 = vmax.f32 %v367, %v368
    %v370 = vrot.slane %v369, 1
    %v371 = vmax.f32 %v369, %v370
    %v372 = vsub.f32 %v356, %v364
    %v373 = vsub.f32 %v357, %v371
    %v374 = vmul.f32 %v372, 1.442695
    %v375 = vpow.pop %v374
    %v376 = vmul.f32 %v373, 1.442695
    %v377 = vpow.pop %v376
    %v378 = vsel %vm315, %v375, 0.0
    %v379 = vrot.slane %v378, 4
    %v380 = vadd.f32 %v378, %v379
    %v381 = vrot.slane %v380, 2
    %v382 = vadd.f32 %v380, %v381
    %v383 = vrot.slane %v382, 1
    %v384 = vadd.f32 %v382, %v383
    %v385 = vsel %vm315, %v377, 0.0
    %v386 = vrot.slane %v385, 4
    %v387 = vadd.f32 %v385, %v386
    %v388 = vrot.slane %v387, 2
    %v389 = vadd.f32 %v387, %v388
    %v390 = vrot.slane %v389, 1
    %v391 = vadd.f32 %v389, %v390
    %v392 = vrcp.pop %v384
    %v393 = vmul.f32 %v375, %v392
    %v394 = vrcp.pop %v391
    %v395 = vmul.f32 %v377, %v394
    %397 = vset.pattern.permute.xlu0 0
    %398 = vperm.xlu0 %397, %v393
    %v399 = vpop.permute.xlu0 %398
    %402 = vset.pattern.permute.xlu0 0
    %403 = vperm.xlu0 %402, %v395
    %v404 = vpop.permute.xlu0 %403
    %v406 = vmul.f32 %v399, %v220
    %v407 = vmul.f32 %v404, %v221
    %v408 = vrot.slane %v406, 4
    %v409 = vadd.f32 %v406, %v408
    %v410 = vrot.slane %v409, 2
    %v411 = vadd.f32 %v409, %v410
    %v412 = vrot.slane %v411, 1
    %v413 = vadd.f32 %v411, %v412
    %v414 = vrot.slane %v407, 4
    %v415 = vadd.f32 %v407, %v414
    %v416 = vrot.slane %v415, 2
    %v417 = vadd.f32 %v415, %v416
    %v418 = vrot.slane %v417, 1
    %v419 = vadd.f32 %v417, %v418
    %v420 = vpack.c.bf16 %v413, %v413
    %v421 = vpack.c.bf16 %v419, %v419
    %v422 = vld [vmem:[%s6] sm:$0xf]
    %v423 = vld [vmem:[%s6 + $0x4] sm:$0xf]
    %v424 = vld [vmem:[%s6 + $0x8] sm:$0xf]
    %v425 = vld [vmem:[%s6 + $0xc] sm:$0xf]
    %v426 = vld [vmem:[%s6 + $0x10] sm:$0xf]
    %v427 = vld [vmem:[%s6 + $0x14] sm:$0xf]
    %v428 = vld [vmem:[%s6 + $0x18] sm:$0xf]
    %v429 = vld [vmem:[%s6 + $0x1c] sm:$0xf]
    %v430 = vld [vmem:[%s6 + $0x20] sm:$0xf]
    %v431 = vld [vmem:[%s6 + $0x24] sm:$0xf]
    %v432 = vld [vmem:[%s6 + $0x28] sm:$0xf]
    %v433 = vld [vmem:[%s6 + $0x2c] sm:$0xf]
    %v434 = vld [vmem:[%s6 + $0x30] sm:$0xf]
    %v435 = vld [vmem:[%s6 + $0x34] sm:$0xf]
    %v436 = vld [vmem:[%s6 + $0x38] sm:$0xf]
    %v437 = vld [vmem:[%s6 + $0x3c] sm:$0xf]
    %v438 = vld [vmem:[%s7] sm:$0x1]
    %v440 = vlaneseq
    %v441 = vshrl.u32 %v440, 7
    %v442 = vsub.s32 0, %v441
    %v443 = vrot.slane %v438, %v442
    %v447 = vunpack.c.l.b16 %v420
    %v448 = vunpack.c.l.b16 %v421
    %vm449 = vcmask 1041409
    %v450 = vsel %vm449, %v448, %v447
    %v451 = vpack.c.b16 %v450, %v450
    %v469 = vunpack.c.l.b16 %v422
    %v470 = vunpack.c.l.b16 %v423
    %v471 = vunpack.c.l.b16 %v424
    %v472 = vunpack.c.l.b16 %v425
    %v473 = vunpack.c.l.b16 %v426
    %v474 = vunpack.c.l.b16 %v427
    %v475 = vunpack.c.l.b16 %v428
    %v476 = vunpack.c.l.b16 %v429
    %v477 = vunpack.c.l.b16 %v430
    %v478 = vunpack.c.l.b16 %v431
    %v479 = vunpack.c.l.b16 %v432
    %v480 = vunpack.c.l.b16 %v433
    %v481 = vunpack.c.l.b16 %v434
    %v482 = vunpack.c.l.b16 %v435
    %v483 = vunpack.c.l.b16 %v436
    %v484 = vunpack.c.l.b16 %v437
    %v485 = vpack.c.b16 %v470, %v469
    %v486 = vpack.c.b16 %v472, %v471
    %v487 = vpack.c.b16 %v474, %v473
    %v488 = vpack.c.b16 %v476, %v475
    %v489 = vpack.c.b16 %v478, %v477
    %v490 = vpack.c.b16 %v480, %v479
    %v491 = vpack.c.b16 %v482, %v481
    %v492 = vpack.c.b16 %v484, %v483
    %501 = vmatprep.subr.bf16.mxu0 0
    %502 = vmatpush1.bf16.msra.mxu0 %v492
    %503 = vmatprep.subr.bf16.mxu0 0
    %504 = vmatpush1.bf16.msra.mxu0 %v491
    %505 = vmatprep.subr.bf16.mxu0 0
    %506 = vmatpush1.bf16.msra.mxu0 %v490
    %507 = vmatprep.subr.bf16.mxu0 0
    %508 = vmatpush1.bf16.msra.mxu0 %v489
    %509 = vmatprep.subr.bf16.mxu0 0
    %510 = vmatpush1.bf16.msra.mxu0 %v488
    %511 = vmatprep.subr.bf16.mxu0 0
    %512 = vmatpush1.bf16.msra.mxu0 %v487
    %513 = vmatprep.subr.bf16.mxu0 0
    %514 = vmatpush1.bf16.msra.mxu0 %v486
    %515 = vmatprep.subr.bf16.mxu0 0
    %516 = vmatpush1.bf16.msra.mxu0 %v485
    %517 = vmatprep.subr.bf16.mxu0 0
    %518 = vmatpush2.bf16.msra.mxu0 0
    %519 = vmatprep.subr.bf16.mxu0 0
    %520 = vmatpush2.bf16.msra.mxu0 0
    %521 = vmatprep.subr.bf16.mxu0 0
    %522 = vmatpush2.bf16.msra.mxu0 0
    %523 = vmatprep.subr.bf16.mxu0 0
    %524 = vmatpush2.bf16.msra.mxu0 0
    %525 = vmatprep.subr.bf16.mxu0 0
    %526 = vmatpush2.bf16.msra.mxu0 0
    %527 = vmatprep.subr.bf16.mxu0 0
    %528 = vmatpush2.bf16.msra.mxu0 0
    %529 = vmatprep.subr.bf16.mxu0 0
    %530 = vmatpush2.bf16.msra.mxu0 0
    %531 = vmatprep.subr.bf16.mxu0 0
    %532 = vmatpush2.bf16.msra.mxu0 0
    %533 = vmatprep.mubr.bf16.mxu0 0
    %534 = vmatmul.mubr.bf16.gmra.mxu0 %v451
    %v535 = vpop.f32.mrf.mxu0
    %v536 = vadd.f32 %v443, %v535
    %v537 = vpop.f32.mrf.mxu0
    %v538 = vpop.f32.mrf.mxu0
    %v539 = vpop.f32.mrf.mxu0
    %540 = vdwg.mxu0
    %v541 = vmax.f32 %v536, 0.0
    %v542 = vpack.c.bf16 %v541, %v541
    %v543 = vld [vmem:[%s8] sm:$0xf]
    %v544 = vld [vmem:[%s8 + $0x4] sm:$0xf]
    %v545 = vld [vmem:[%s8 + $0x8] sm:$0xf]
    %v546 = vld [vmem:[%s8 + $0xc] sm:$0xf]
    %v547 = vld [vmem:[%s8 + $0x10] sm:$0xf]
    %v548 = vld [vmem:[%s8 + $0x14] sm:$0xf]
    %v549 = vld [vmem:[%s8 + $0x18] sm:$0xf]
    %v550 = vld [vmem:[%s8 + $0x1c] sm:$0xf]
    %v551 = vld [vmem:[%s8 + $0x20] sm:$0xf]
    %v552 = vld [vmem:[%s8 + $0x24] sm:$0xf]
    %v553 = vld [vmem:[%s8 + $0x28] sm:$0xf]
    %v554 = vld [vmem:[%s8 + $0x2c] sm:$0xf]
    %v555 = vld [vmem:[%s8 + $0x30] sm:$0xf]
    %v556 = vld [vmem:[%s8 + $0x34] sm:$0xf]
    %v557 = vld [vmem:[%s8 + $0x38] sm:$0xf]
    %v558 = vld [vmem:[%s8 + $0x3c] sm:$0xf]
    %v559 = vld [vmem:[%s9] sm:$0x1]
    %v561 = vlaneseq
    %v562 = vshrl.u32 %v561, 7
    %v563 = vsub.s32 0, %v562
    %v564 = vrot.slane %v559, %v563
    %v582 = vunpack.c.l.b16 %v543
    %v583 = vunpack.c.l.b16 %v544
    %v584 = vunpack.c.l.b16 %v545
    %v585 = vunpack.c.l.b16 %v546
    %v586 = vunpack.c.l.b16 %v547
    %v587 = vunpack.c.l.b16 %v548
    %v588 = vunpack.c.l.b16 %v549
    %v589 = vunpack.c.l.b16 %v550
    %v590 = vunpack.c.l.b16 %v551
    %v591 = vunpack.c.l.b16 %v552
    %v592 = vunpack.c.l.b16 %v553
    %v593 = vunpack.c.l.b16 %v554
    %v594 = vunpack.c.l.b16 %v555
    %v595 = vunpack.c.l.b16 %v556
    %v596 = vunpack.c.l.b16 %v557
    %v597 = vunpack.c.l.b16 %v558
    %v598 = vpack.c.b16 %v583, %v582
    %v599 = vpack.c.b16 %v585, %v584
    %v600 = vpack.c.b16 %v587, %v586
    %v601 = vpack.c.b16 %v589, %v588
    %v602 = vpack.c.b16 %v591, %v590
    %v603 = vpack.c.b16 %v593, %v592
    %v604 = vpack.c.b16 %v595, %v594
    %v605 = vpack.c.b16 %v597, %v596
    %614 = vmatprep.subr.bf16.mxu0 0
    %615 = vmatpush1.bf16.msra.mxu0 %v605
    %616 = vmatprep.subr.bf16.mxu0 0
    %617 = vmatpush1.bf16.msra.mxu0 %v604
    %618 = vmatprep.subr.bf16.mxu0 0
    %619 = vmatpush1.bf16.msra.mxu0 %v603
    %620 = vmatprep.subr.bf16.mxu0 0
    %621 = vmatpush1.bf16.msra.mxu0 %v602
    %622 = vmatprep.subr.bf16.mxu0 0
    %623 = vmatpush1.bf16.msra.mxu0 %v601
    %624 = vmatprep.subr.bf16.mxu0 0
    %625 = vmatpush1.bf16.msra.mxu0 %v600
    %626 = vmatprep.subr.bf16.mxu0 0
    %627 = vmatpush1.bf16.msra.mxu0 %v599
    %628 = vmatprep.subr.bf16.mxu0 0
    %629 = vmatpush1.bf16.msra.mxu0 %v598
    %630 = vmatprep.subr.bf16.mxu0 0
    %631 = vmatpush2.bf16.msra.mxu0 0
    %632 = vmatprep.subr.bf16.mxu0 0
    %633 = vmatpush2.bf16.msra.mxu0 0
    %634 = vmatprep.subr.bf16.mxu0 0
    %635 = vmatpush2.bf16.msra.mxu0 0
    %636 = vmatprep.subr.bf16.mxu0 0
    %637 = vmatpush2.bf16.msra.mxu0 0
    %638 = vmatprep.subr.bf16.mxu0 0
    %639 = vmatpush2.bf16.msra.mxu0 0
    %640 = vmatprep.subr.bf16.mxu0 0
    %641 = vmatpush2.bf16.msra.mxu0 0
    %642 = vmatprep.subr.bf16.mxu0 0
    %643 = vmatpush2.bf16.msra.mxu0 0
    %644 = vmatprep.subr.bf16.mxu0 0
    %645 = vmatpush2.bf16.msra.mxu0 0
    %646 = vmatprep.mubr.bf16.mxu0 0
    %647 = vmatmul.mubr.bf16.gmra.mxu0 %v542
    %v648 = vpop.f32.mrf.mxu0
    %v649 = vadd.f32 %v564, %v648
    %v650 = vpop.f32.mrf.mxu0
    %v651 = vpop.f32.mrf.mxu0
    %v652 = vpop.f32.mrf.mxu0
    %653 = vdwg.mxu0
    %654 = vst [vmem:[#allocation10] sm:$0x3] %v649
    // Predicated region
    $region58: #{tpu_custom_call.1} parent=1 // pred_check
      _
    $region59: #{tpu_custom_call.1} parent=1 // pred_check_branch
      %656 = sbr.rel (0) target = $region61
    $region60: #{tpu_custom_call.1} parent=1 // pred_region
      %s658 = ssub.s32 32, 32
      %659 = vsyncadd [#allocation4], %s658
      %s661 = sshll.u32 [#allocation10], 4
      %s662 = int_to_ptr.vmem [resolvable:$true] %s661
      %664 = dma.vmem_to_hbm [thread:$0]  %s662, 32, %s10, [#allocation4]
    $region61: #{tpu_custom_call.1} parent=1 // pred_fallthru
      _
    // Predicated region
    $region62: #{tpu_custom_call.1} parent=1 // pred_check
      _
    $region63: #{tpu_custom_call.1} parent=1 // pred_check_branch
      %666 = sbr.rel (0) target = $region65
    $region64: #{tpu_custom_call.1} parent=1 // pred_region
      %667 = dma.done [#allocation4], 32
    $region65: #{tpu_custom_call.1} parent=1 // pred_fallthru
      _
    %668 = vsyncpa [#allocation3], 1
    %669 = vsyncpa [#allocation6], 1
    %670 = vsyncpa [#allocation9], 1
    %671 = vsyncpa [#allocation4], 1

</llo_original>
